<compile_context>
chip_gen: v7x
topology: tpu7x:2x2x1
jax: 0.10.0
libtpu: 0.0.40
codegen_flags: <defaults>
</compile_context>

<pallas_src>
import functools

import jax
import jax.numpy as jnp
import numpy as np
from jax import lax
from jax.experimental import pallas as pl
from jax.experimental.pallas import tpu as pltpu

TEMPERATURE = 0.1


def _ntxent_block_kernel(x_ref, y_ref, m_ref, out_ref):
    # x_ref / y_ref: (LB, T, D) in the caller's dtype (bf16 or f32).
    # m_ref:         (LB, 4, T) int32 fused mask slab: [cx, rx, cy, ry] on axis 1.
    # out_ref:       (1, 1, LB) per-line losses (lane-ordered).
    x = x_ref[...].astype(jnp.float32)
    y = y_ref[...].astype(jnp.float32)
    m = m_ref[...]

    cx = m[:, 0, :].astype(jnp.float32)   # (LB, T) combined (shift & image) row mask for x
    rx = m[:, 1, :]                       # (LB, T) rank among selected x rows (-1 if not)
    cy = m[:, 2, :].astype(jnp.float32)   # (LB, T) combined col mask for y
    ry = m[:, 3, :]                       # (LB, T) rank among selected y cols (-2 if not)

    # L2 normalize in f32 (torch.nn.functional.normalize, eps=1e-12):
    #   x / max(||x||, eps) == x * rsqrt(max(||x||^2, eps^2))
    eps2 = jnp.float32(1e-24)
    xn = x * lax.rsqrt(jnp.maximum(jnp.sum(x * x, axis=-1, keepdims=True), eps2))
    yn = y * lax.rsqrt(jnp.maximum(jnp.sum(y * y, axis=-1, keepdims=True), eps2))

    # similarities[l, i, j] = <xn_li, yn_lj> / temperature
    # Single-pass bf16 MXU matmul with f32 accumulation.
    s = jnp.einsum(
        "lid,ljd->lij",
        xn.astype(jnp.bfloat16),
        yn.astype(jnp.bfloat16),
        preferred_element_type=jnp.float32,
    ) * jnp.float32(1.0 / TEMPERATURE)                      # (LB, T, T)

    # Denominator per column: sum of exp over the selected x rows.
    # TODO(synk): for very large T (>= ~1k) stream 256-512-wide column blocks of
    # yn so the (LB,T,T) intermediates stay within v7x's 64 MiB VMEM.
    e = jnp.exp(s) * cx[:, :, None]                          # (LB, T, T)
    colsum = jnp.sum(e, axis=1)                              # (LB, T)

    # "Diagonal" of the doubly-selected matrix, in log space: the row whose
    # selection rank matches the column's rank.  Sentinels (-1 for unselected
    # rows, -2 for unselected cols) never match, so no extra masking is needed.
    pair = rx[:, :, None] == ry[:, None, :]                  # (LB, T, T)
    s_diag = jnp.sum(jnp.where(pair, s, 0.0), axis=1)        # (LB, T)

    loss_j = jnp.log(colsum) - s_diag                        # == -log(exp(s_jj)/colsum)
    lsum = jnp.sum(jnp.where(cy > 0.0, loss_j, 0.0), axis=1)  # (LB,)
    cnt = jnp.sum(cy, axis=1)                                 # (LB,)
    per_line = lsum / cnt                                     # (LB,)
    out_ref[...] = jnp.reshape(per_line, (1, 1, per_line.shape[0]))


def _combined_mask_and_rank(shift_mask, image_mask, invalid):
    """Glue: replicate `x[shift==1][image==1]` selection as static masks.

    image_mask[k] applies to the k-th shift-selected row (same convention the
    PyTorch code needs for its boolean indexing to be shape-consistent).
    Returns (combined_mask i32 [B,T], rank-among-selected i32 [B,T]).
    """
    T = shift_mask.shape[1]
    sm = shift_mask.astype(jnp.int32)
    im = image_mask.astype(jnp.int32)
    rank_shift = jnp.cumsum(sm, axis=1) - 1
    idx = jnp.clip(rank_shift, 0, T - 1)
    img_sel = jnp.take_along_axis(im, idx, axis=1)
    combined = sm * img_sel
    rank = jnp.cumsum(combined, axis=1) - 1
    rank = jnp.where(combined == 1, rank, invalid).astype(jnp.int32)
    return combined.astype(jnp.int32), rank


@functools.partial(jax.jit, static_argnames=("line_block",))
def ntxent_loss(x, y, image_masks1, image_masks2, shift_masks1, shift_masks2,
                line_block=8):
    B, T, D = x.shape

    cx, rx = _combined_mask_and_rank(shift_masks1, image_masks1, invalid=-1)
    cy, ry = _combined_mask_and_rank(shift_masks2, image_masks2, invalid=-2)
    # One lane-dense i32 slab per line: rows = [cx, rx, cy, ry].
    masks = jnp.stack([cx, rx, cy, ry], axis=1).astype(jnp.int32)   # (B, 4, T)

    # Batch LB lines per grid step (pad by repeating the last line; the padded
    # losses are finite and dropped before the mean).
    LB = int(max(1, min(line_block, B)))
    pad = (-B) % LB
    if pad:
        x = jnp.concatenate([x, jnp.repeat(x[-1:], pad, axis=0)], axis=0)
        y = jnp.concatenate([y, jnp.repeat(y[-1:], pad, axis=0)], axis=0)
        masks = jnp.concatenate([masks, jnp.repeat(masks[-1:], pad, axis=0)], axis=0)
    nblk = (B + pad) // LB

    per_line = pl.pallas_call(
        _ntxent_block_kernel,
        out_shape=jax.ShapeDtypeStruct((nblk, 1, LB), jnp.float32),
        grid=(nblk,),
        in_specs=[
            pl.BlockSpec((LB, T, D), lambda b: (b, 0, 0)),   # x (native dtype)
            pl.BlockSpec((LB, T, D), lambda b: (b, 0, 0)),   # y (native dtype)
            pl.BlockSpec((LB, 4, T), lambda b: (b, 0, 0)),   # fused masks
        ],
        out_specs=pl.BlockSpec((1, 1, LB), lambda b: (b, 0, 0)),
        compiler_params=pltpu.CompilerParams(
            dimension_semantics=("parallel",),
        ),
    )(x, y, masks)

    loss = jnp.mean(per_line.reshape(-1)[:B])
    return {"loss": loss}


def _numpy_reference(x, y, image1, image2, shift1, shift2, temperature=TEMPERATURE):
    """Direct transcription of the PyTorch module (dynamic boolean indexing)."""
    B = x.shape[0]
    losses = []
    for b in range(B):
        xn = x[b] / np.maximum(np.linalg.norm(x[b], axis=-1, keepdims=True), 1e-12)
        yn = y[b] / np.maximum(np.linalg.norm(y[b], axis=-1, keepdims=True), 1e-12)
        xs = xn[shift1[b] == 1]
        ys = yn[shift2[b] == 1]
        sim = xs @ ys.T / temperature
        imx = image1[b][: xs.shape[0]]
        imy = image2[b][: ys.shape[0]]
        sim = sim[imx == 1, :][:, imy == 1]
        e = np.exp(sim)
        l = -np.log(np.diag(e) / e.sum(axis=0))
        losses.append(l.mean())
    return float(np.mean(losses))


if __name__ == "__main__":
    B, T, D = 2, 8, 32
    key = jax.random.PRNGKey(0)
    kx, ky = jax.random.split(key)
    x = jax.random.normal(kx, (B, T, D), dtype=jnp.float32)
    y = jax.random.normal(ky, (B, T, D), dtype=jnp.float32)

    # shift masks: which tokens of each line are used at all
    shift1 = jnp.array([[1, 1, 1, 1, 1, 1, 0, 0],
                        [1, 1, 1, 1, 1, 1, 1, 0]], dtype=jnp.int32)
    shift2 = jnp.array([[1, 1, 1, 1, 1, 1, 1, 0],
                        [1, 1, 1, 1, 1, 1, 0, 0]], dtype=jnp.int32)
    # image masks: indexed over the shift-selected tokens (first sum(shift) used)
    image1 = jnp.array([[1, 1, 0, 1, 1, 1, 0, 0],
                        [1, 1, 1, 1, 0, 1, 1, 0]], dtype=jnp.int32)
    image2 = jnp.array([[1, 1, 1, 1, 0, 1, 0, 0],
                        [1, 0, 1, 1, 1, 1, 0, 0]], dtype=jnp.int32)

    out = ntxent_loss(x, y, image1, image2, shift1, shift2)
    loss = jax.block_until_ready(out["loss"])

    ref = _numpy_reference(np.asarray(x), np.asarray(y), np.asarray(image1),
                           np.asarray(image2), np.asarray(shift1), np.asarray(shift2))
    # Tolerance widened vs. the f32-HIGHEST version: the similarities are now
    # computed with a single-pass bf16 MXU matmul (f32 accumulation).
    np.testing.assert_allclose(float(loss), ref, rtol=2e-2, atol=2e-2)
    print("KERNEL_OK")
</pallas_src>

<mosaic_0001>
module attributes {stable_mosaic.version = 11 : i64} {
  func.func @_ntxent_block_kernel(%arg0: i32, %arg1: memref<2x8x32xf32, #tpu.memory_space<vmem>>, %arg2: memref<2x8x32xf32, #tpu.memory_space<vmem>>, %arg3: memref<2x4x8xi32, #tpu.memory_space<vmem>>, %arg4: memref<1x1x2xf32, #tpu.memory_space<vmem>>) attributes {dimension_semantics = [#tpu.dimension_semantics<parallel>], iteration_bounds = array<i64: 1>, scalar_prefetch = 0 : i64, scratch_operands = 0 : i64, tpu.core_type = #tpu.core_type<tc>, window_params = [{transform_indices = @transform_0, window_bounds = array<i64: 2, 8, 32>}, {transform_indices = @transform_1, window_bounds = array<i64: 2, 8, 32>}, {transform_indices = @transform_2, window_bounds = array<i64: 2, 4, 8>}, {transform_indices = @transform_3, window_bounds = array<i64: 1, 1, 2>}]} {
    %c0 = arith.constant 0 : index
    %c0_0 = arith.constant 0 : index
    %c0_1 = arith.constant 0 : index
    %0 = vector.load %arg1[%c0, %c0_0, %c0_1] : memref<2x8x32xf32, #tpu.memory_space<vmem>>, vector<2x8x32xf32>
    %c0_2 = arith.constant 0 : index
    %c0_3 = arith.constant 0 : index
    %c0_4 = arith.constant 0 : index
    %1 = vector.load %arg2[%c0_2, %c0_3, %c0_4] : memref<2x8x32xf32, #tpu.memory_space<vmem>>, vector<2x8x32xf32>
    %c0_5 = arith.constant 0 : index
    %c0_6 = arith.constant 0 : index
    %c0_7 = arith.constant 0 : index
    %2 = vector.load %arg3[%c0_5, %c0_6, %c0_7] : memref<2x4x8xi32, #tpu.memory_space<vmem>>, vector<2x4x8xi32>
    %3 = vector.extract_strided_slice %2 {offsets = [0, 0, 0], sizes = [2, 1, 8], strides = [1, 1, 1]} : vector<2x4x8xi32> to vector<2x1x8xi32>
    %4 = vector.shape_cast %3 : vector<2x1x8xi32> to vector<2x8xi32>
    %5 = arith.sitofp %4 : vector<2x8xi32> to vector<2x8xf32>
    %6 = vector.extract_strided_slice %2 {offsets = [0, 1, 0], sizes = [2, 1, 8], strides = [1, 1, 1]} : vector<2x4x8xi32> to vector<2x1x8xi32>
    %7 = vector.shape_cast %6 : vector<2x1x8xi32> to vector<2x8xi32>
    %8 = vector.extract_strided_slice %2 {offsets = [0, 2, 0], sizes = [2, 1, 8], strides = [1, 1, 1]} : vector<2x4x8xi32> to vector<2x1x8xi32>
    %9 = vector.shape_cast %8 : vector<2x1x8xi32> to vector<2x8xi32>
    %10 = arith.sitofp %9 : vector<2x8xi32> to vector<2x8xf32>
    %11 = vector.extract_strided_slice %2 {offsets = [0, 3, 0], sizes = [2, 1, 8], strides = [1, 1, 1]} : vector<2x4x8xi32> to vector<2x1x8xi32>
    %12 = vector.shape_cast %11 : vector<2x1x8xi32> to vector<2x8xi32>
    %13 = arith.mulf %0, %0 : vector<2x8x32xf32>
    %cst = arith.constant dense<0.000000e+00> : vector<2x8xf32>
    %14 = vector.multi_reduction <add>, %13, %cst [2] : vector<2x8x32xf32> to vector<2x8xf32>
    %15 = vector.shape_cast %14 : vector<2x8xf32> to vector<2x8x1xf32>
    %cst_8 = arith.constant 1.000000e-24 : f32
    %16 = vector.broadcast %cst_8 : f32 to vector<2x8x1xf32>
    %17 = arith.maximumf %15, %16 : vector<2x8x1xf32>
    %18 = math.rsqrt %17 : vector<2x8x1xf32>
    %19 = vector.broadcast %18 : vector<2x8x1xf32> to vector<2x8x32xf32>
    %20 = arith.mulf %0, %19 : vector<2x8x32xf32>
    %21 = arith.mulf %1, %1 : vector<2x8x32xf32>
    %cst_9 = arith.constant dense<0.000000e+00> : vector<2x8xf32>
    %22 = vector.multi_reduction <add>, %21, %cst_9 [2] : vector<2x8x32xf32> to vector<2x8xf32>
    %23 = vector.shape_cast %22 : vector<2x8xf32> to vector<2x8x1xf32>
    %cst_10 = arith.constant 1.000000e-24 : f32
    %24 = vector.broadcast %cst_10 : f32 to vector<2x8x1xf32>
    %25 = arith.maximumf %23, %24 : vector<2x8x1xf32>
    %26 = math.rsqrt %25 : vector<2x8x1xf32>
    %27 = vector.broadcast %26 : vector<2x8x1xf32> to vector<2x8x32xf32>
    %28 = arith.mulf %1, %27 : vector<2x8x32xf32>
    %29 = arith.truncf %20 : vector<2x8x32xf32> to vector<2x8x32xbf16>
    %30 = arith.truncf %28 : vector<2x8x32xf32> to vector<2x8x32xbf16>
    "tpu.trace_start"() <{level = 10 : i32, message = "lid,ljd->lij"}> : () -> ()
    %cst_11 = arith.constant dense<0.000000e+00> : vector<2x8x8xf32>
    %31 = tpu.matmul %29, %30, %cst_11 {dimension_numbers = #tpu.dot_dimension_numbers<[2], [2], [1], [1], [0, 0, 0, 1, 1, 1], [0], [0]>} : vector<2x8x32xbf16>, vector<2x8x32xbf16>, vector<2x8x8xf32> -> vector<2x8x8xf32>
    "tpu.trace_stop"() : () -> ()
    %cst_12 = arith.constant 1.000000e+01 : f32
    %32 = vector.broadcast %cst_12 : f32 to vector<2x8x8xf32>
    %33 = arith.mulf %31, %32 : vector<2x8x8xf32>
    %34 = math.exp %33 : vector<2x8x8xf32>
    %35 = vector.shape_cast %5 : vector<2x8xf32> to vector<2x8x1xf32>
    %36 = vector.broadcast %35 : vector<2x8x1xf32> to vector<2x8x8xf32>
    %37 = arith.mulf %34, %36 : vector<2x8x8xf32>
    %cst_13 = arith.constant dense<0.000000e+00> : vector<2x8xf32>
    %38 = vector.multi_reduction <add>, %37, %cst_13 [1] : vector<2x8x8xf32> to vector<2x8xf32>
    %39 = vector.shape_cast %7 : vector<2x8xi32> to vector<2x8x1xi32>
    %40 = vector.shape_cast %12 : vector<2x8xi32> to vector<2x1x8xi32>
    %41 = vector.broadcast %39 : vector<2x8x1xi32> to vector<2x8x8xi32>
    %42 = vector.broadcast %40 : vector<2x1x8xi32> to vector<2x8x8xi32>
    %43 = arith.cmpi eq, %41, %42 : vector<2x8x8xi32>
    %cst_14 = arith.constant 0.000000e+00 : f32
    %44 = vector.broadcast %cst_14 : f32 to vector<2x8x8xf32>
    %45 = arith.select %43, %33, %44 : vector<2x8x8xi1>, vector<2x8x8xf32>
    %cst_15 = arith.constant dense<0.000000e+00> : vector<2x8xf32>
    %46 = vector.multi_reduction <add>, %45, %cst_15 [1] : vector<2x8x8xf32> to vector<2x8xf32>
    %47 = math.log %38 : vector<2x8xf32>
    %48 = arith.subf %47, %46 : vector<2x8xf32>
    %cst_16 = arith.constant 0.000000e+00 : f32
    %49 = vector.broadcast %cst_16 : f32 to vector<2x8xf32>
    %50 = arith.cmpf ogt, %10, %49 : vector<2x8xf32>
    %cst_17 = arith.constant 0.000000e+00 : f32
    %51 = vector.broadcast %cst_17 : f32 to vector<2x8xf32>
    %52 = arith.select %50, %48, %51 : vector<2x8xi1>, vector<2x8xf32>
    %cst_18 = arith.constant dense<0.000000e+00> : vector<2xf32>
    %53 = vector.multi_reduction <add>, %52, %cst_18 [1] : vector<2x8xf32> to vector<2xf32>
    %cst_19 = arith.constant dense<0.000000e+00> : vector<2xf32>
    %54 = vector.multi_reduction <add>, %10, %cst_19 [1] : vector<2x8xf32> to vector<2xf32>
    %55 = arith.divf %53, %54 : vector<2xf32>
    %56 = vector.shape_cast %55 : vector<2xf32> to vector<1x1x2xf32>
    %c0_20 = arith.constant 0 : index
    %c0_21 = arith.constant 0 : index
    %c0_22 = arith.constant 0 : index
    %57 = vector.load %arg4[%c0_20, %c0_21, %c0_22] : memref<1x1x2xf32, #tpu.memory_space<vmem>>, vector<1x1x2xf32>
    tpu.vector_store %arg4[%c0_20, %c0_21, %c0_22], %56 {strides = array<i32>} : memref<1x1x2xf32, #tpu.memory_space<vmem>>, vector<1x1x2xf32>,
    return
  }
  func.func @transform_0(%arg0: i32) -> (i32, i32, i32) {
    %c0_i32 = arith.constant 0 : i32
    %c0_i32_0 = arith.constant 0 : i32
    %c0_i32_1 = arith.constant 0 : i32
    return %arg0, %c0_i32, %c0_i32_0 : i32, i32, i32
  }
  func.func @transform_1(%arg0: i32) -> (i32, i32, i32) {
    %c0_i32 = arith.constant 0 : i32
    %c0_i32_0 = arith.constant 0 : i32
    %c0_i32_1 = arith.constant 0 : i32
    return %arg0, %c0_i32, %c0_i32_0 : i32, i32, i32
  }
  func.func @transform_2(%arg0: i32) -> (i32, i32, i32) {
    %c0_i32 = arith.constant 0 : i32
    %c0_i32_0 = arith.constant 0 : i32
    %c0_i32_1 = arith.constant 0 : i32
    return %arg0, %c0_i32, %c0_i32_0 : i32, i32, i32
  }
  func.func @transform_3(%arg0: i32) -> (i32, i32, i32) {
    %c0_i32 = arith.constant 0 : i32
    %c0_i32_0 = arith.constant 0 : i32
    %c0_i32_1 = arith.constant 0 : i32
    return %arg0, %c0_i32, %c0_i32_0 : i32, i32, i32
  }
}

</mosaic_0001>

<llo_original>
// kernel: ntxent_loss.1
$region0: #{ntxent_loss.1}
  #allocation0 [shape = 'u32[]', space=smem, size = 0x4, offset = 0x4, fixed_abs, tag = 'smem constant byte address 0x4 - core index']
  #allocation1 [shape = 'u32[144,128]{1,0:T(1,128)}', space=vmem, size = 0x12000, scoped, tag = 'internal scratch']
  %s0 = inlined_call_operand.vmem [shape: f32[2,8,32], index: 0, kind: input, shape index: {}]
  %s1 = inlined_call_operand.vmem [shape: f32[2,8,32], index: 1, kind: input, shape index: {}]
  %s2 = inlined_call_operand.vmem [shape: s32[2,4,8], index: 2, kind: input, shape index: {}]
  %s3 = inlined_call_operand.vmem [shape: f32[1,1,2], index: 3, kind: output, shape index: {}]
  %s4 = sld [smem:[#allocation0]]
  $region22: #{ntxent_loss.1} parent=0
    _
  %s6 = ssub.s32 1, %s4
  %s7 = scalar_select 0, %s6, %s4
  // Predicated region
  $region2: #{ntxent_loss.1} parent=0 // pred_check
    _
  $region3: #{ntxent_loss.1} parent=0 // pred_check_branch
    %9 = sbr.rel (0) target = $region5
  $region4: #{ntxent_loss.1} parent=0 // pred_region
    _
  $region5: #{ntxent_loss.1} parent=0 // pred_fallthru
    _
  // Predicated region
  $region6: #{ntxent_loss.1} parent=0 // pred_check
    _
  $region7: #{ntxent_loss.1} parent=0 // pred_check_branch
    %11 = sbr.rel (0) target = $region9
  $region8: #{ntxent_loss.1} parent=0 // pred_region
    _
  $region9: #{ntxent_loss.1} parent=0 // pred_fallthru
    _
  // Predicated region
  $region10: #{ntxent_loss.1} parent=0 // pred_check
    _
  $region11: #{ntxent_loss.1} parent=0 // pred_check_branch
    %13 = sbr.rel (0) target = $region13
  $region12: #{ntxent_loss.1} parent=0 // pred_region
    _
  $region13: #{ntxent_loss.1} parent=0 // pred_fallthru
    _
  %v15 = vld [vmem:[%s0] sm:$0xff]
  %v16 = vld [vmem:[%s0 + $0x8] sm:$0xff]
  %v17 = vld [vmem:[%s1] sm:$0xff]
  %v18 = vld [vmem:[%s1 + $0x8] sm:$0xff]
  %v19 = vld [vmem:[%s2] sm:$0xf]
  %v20 = vld [vmem:[%s2 + $0x4] sm:$0xf]
  %v21 = vcvt.s32.f32 %v19
  %v22 = vcvt.s32.f32 %v20
  %v23 = vmul.f32 %v15, %v15
  %v24 = vmul.f32 %v16, %v16
  %vm25 = vcmask 261120
  %v26 = vsel %vm25, %v23, 0.0
  %27 = vadd.xlane.f32.xlu0 %v26
  %v28 = vpop.xlane.xlu0 %27
  %v29 = vsel %vm25, %v24, 0.0
  %30 = vadd.xlane.f32.xlu0 %v29
  %v31 = vpop.xlane.xlu0 %30
  %v32 = vmax.f32 %v28, 1e-24
  %v33 = vmax.f32 %v31, 1e-24
  %v34 = vrsqrt.pop %v32
  %v35 = vrsqrt.pop %v33
  %v36 = vmul.f32 %v15, %v34
  %v37 = vmul.f32 %v16, %v35
  %v38 = vmul.f32 %v17, %v17
  %v39 = vmul.f32 %v18, %v18
  %v40 = vsel %vm25, %v38, 0.0
  %41 = vadd.xlane.f32.xlu0 %v40
  %v42 = vpop.xlane.xlu0 %41
  %v43 = vsel %vm25, %v39, 0.0
  %44 = vadd.xlane.f32.xlu0 %v43
  %v45 = vpop.xlane.xlu0 %44
  %v46 = vmax.f32 %v42, 1e-24
  %v47 = vmax.f32 %v45, 1e-24
  %v48 = vrsqrt.pop %v46
  %v49 = vrsqrt.pop %v47
  %v50 = vmul.f32 %v17, %v48
  %v51 = vmul.f32 %v18, %v49
  %v52 = vpack.c.bf16 %v36, %v36
  %v53 = vpack.c.bf16 %v37, %v37
  %v54 = vpack.c.bf16 %v50, %v50
  %v55 = vpack.c.bf16 %v51, %v51
  %v57 = vsel %vm25, %v52, 0
  %v60 = vsel %vm25, %v54, 0
  %62 = vmatprep.subr.bf16.mxu0 0
  %63 = vmatpush1.bf16.xpose.msra.mxu0 %v60
  %64 = vmatprep.subr.bf16.mxu0 0
  %65 = vmatpush1.bf16.xpose.msra.mxu0 0
  %66 = vmatprep.subr.bf16.mxu0 0
  %67 = vmatpush1.bf16.xpose.msra.mxu0 0
  %68 = vmatprep.subr.bf16.mxu0 0
  %69 = vmatpush1.bf16.xpose.msra.mxu0 0
  %70 = vmatprep.subr.bf16.mxu0 0
  %71 = vmatpush1.bf16.xpose.msra.mxu0 0
  %72 = vmatprep.subr.bf16.mxu0 0
  %73 = vmatpush1.bf16.xpose.msra.mxu0 0
  %74 = vmatprep.subr.bf16.mxu0 0
  %75 = vmatpush1.bf16.xpose.msra.mxu0 0
  %76 = vmatprep.subr.bf16.mxu0 0
  %77 = vmatpush1.bf16.xpose.msra.mxu0 0
  %78 = vmatprep.subr.bf16.mxu0 0
  %79 = vmatpush1.bf16.xpose.msra.mxu0 0
  %80 = vmatprep.subr.bf16.mxu0 0
  %81 = vmatpush1.bf16.xpose.msra.mxu0 0
  %82 = vmatprep.subr.bf16.mxu0 0
  %83 = vmatpush1.bf16.xpose.msra.mxu0 0
  %84 = vmatprep.subr.bf16.mxu0 0
  %85 = vmatpush1.bf16.xpose.msra.mxu0 0
  %86 = vmatprep.subr.bf16.mxu0 0
  %87 = vmatpush1.bf16.xpose.msra.mxu0 0
  %88 = vmatprep.subr.bf16.mxu0 0
  %89 = vmatpush1.bf16.xpose.msra.mxu0 0
  %90 = vmatprep.subr.bf16.mxu0 0
  %91 = vmatpush1.bf16.xpose.msra.mxu0 0
  %92 = vmatprep.subr.bf16.mxu0 0
  %93 = vmatpush1.bf16.xpose.msra.mxu0 0
  %94 = vmatprep.mubr.bf16.mxu0 0
  %95 = vmatmul.mubr.bf16.gmra.mrb[0].mxu0 %v57
  %v96 = vpop.f32.mrb[0].mxu0
  %v97 = vadd.f32 0.0, %v96
  %v98 = vpop.f32.mrb[0].mxu0
  %v99 = vpop.f32.mrb[0].mxu0
  %v100 = vpop.f32.mrb[0].mxu0
  %101 = vdwg.mxu0
  %v103 = vsel %vm25, %v53, 0
  %v106 = vsel %vm25, %v55, 0
  %108 = vmatprep.subr.bf16.mxu0 0
  %109 = vmatpush1.bf16.xpose.msra.mxu0 %v106
  %110 = vmatprep.subr.bf16.mxu0 0
  %111 = vmatpush1.bf16.xpose.msra.mxu0 0
  %112 = vmatprep.subr.bf16.mxu0 0
  %113 = vmatpush1.bf16.xpose.msra.mxu0 0
  %114 = vmatprep.subr.bf16.mxu0 0
  %115 = vmatpush1.bf16.xpose.msra.mxu0 0
  %116 = vmatprep.subr.bf16.mxu0 0
  %117 = vmatpush1.bf16.xpose.msra.mxu0 0
  %118 = vmatprep.subr.bf16.mxu0 0
  %119 = vmatpush1.bf16.xpose.msra.mxu0 0
  %120 = vmatprep.subr.bf16.mxu0 0
  %121 = vmatpush1.bf16.xpose.msra.mxu0 0
  %122 = vmatprep.subr.bf16.mxu0 0
  %123 = vmatpush1.bf16.xpose.msra.mxu0 0
  %124 = vmatprep.subr.bf16.mxu0 0
  %125 = vmatpush1.bf16.xpose.msra.mxu0 0
  %126 = vmatprep.subr.bf16.mxu0 0
  %127 = vmatpush1.bf16.xpose.msra.mxu0 0
  %128 = vmatprep.subr.bf16.mxu0 0
  %129 = vmatpush1.bf16.xpose.msra.mxu0 0
  %130 = vmatprep.subr.bf16.mxu0 0
  %131 = vmatpush1.bf16.xpose.msra.mxu0 0
  %132 = vmatprep.subr.bf16.mxu0 0
  %133 = vmatpush1.bf16.xpose.msra.mxu0 0
  %134 = vmatprep.subr.bf16.mxu0 0
  %135 = vmatpush1.bf16.xpose.msra.mxu0 0
  %136 = vmatprep.subr.bf16.mxu0 0
  %137 = vmatpush1.bf16.xpose.msra.mxu0 0
  %138 = vmatprep.subr.bf16.mxu0 0
  %139 = vmatpush1.bf16.xpose.msra.mxu0 0
  %140 = vmatprep.mubr.bf16.mxu0 0
  %141 = vmatmul.mubr.bf16.gmra.mrb[0].mxu0 %v103
  %v142 = vpop.f32.mrb[0].mxu0
  %v143 = vadd.f32 0.0, %v142
  %v144 = vpop.f32.mrb[0].mxu0
  %v145 = vpop.f32.mrb[0].mxu0
  %v146 = vpop.f32.mrb[0].mxu0
  %147 = vdwg.mxu0
  %v148 = vmul.f32 %v97, 10.0
  %v149 = vmul.f32 %v143, 10.0
  %v150 = vmul.f32 %v148, 1.442695
  %v151 = vpow.pop %v150
  %v152 = vmul.f32 %v149, 1.442695
  %v153 = vpow.pop %v152
  %v154 = vlaneseq
  %v155 = vshrl.u32 %v154, 7
  %v156 = vsub.s32 0, %v155
  %v157 = vrot.slane %v21, %v156
  %159 = vbcast.lane.b32.xlu0 %v157, 256
  %v160 = vpop.permute.xlu0 %159
  %v161 = vlaneseq
  %v162 = vshrl.u32 %v161, 7
  %v163 = vsub.s32 0, %v162
  %v164 = vrot.slane %v22, %v163
  %166 = vbcast.lane.b32.xlu0 %v164, 256
  %v167 = vpop.permute.xlu0 %166
  %v168 = vmul.f32 %v151, %v160
  %v169 = vmul.f32 %v153, %v167
  %vm170 = vcmask 64512
  %v171 = vsel %vm170, %v168, 0.0
  %v172 = vrot.slane %v171, 4
  %v173 = vadd.f32 %v171, %v172
  %v174 = vrot.slane %v173, 2
  %v175 = vadd.f32 %v173, %v174
  %v176 = vrot.slane %v175, 1
  %v177 = vadd.f32 %v175, %v176
  %v178 = vsel %vm170, %v169, 0.0
  %v179 = vrot.slane %v178, 4
  %v180 = vadd.f32 %v178, %v179
  %v181 = vrot.slane %v180, 2
  %v182 = vadd.f32 %v180, %v181
  %v183 = vrot.slane %v182, 1
  %v184 = vadd.f32 %v182, %v183
  %v185 = vlaneseq
  %v186 = vshrl.u32 %v185, 7
  %v187 = vsub.s32 1, %v186
  %v188 = vrot.slane %v19, %v187
  %190 = vbcast.lane.b32.xlu0 %v188, 256
  %v191 = vpop.permute.xlu0 %190
  %v192 = vlaneseq
  %v193 = vshrl.u32 %v192, 7
  %v194 = vsub.s32 1, %v193
  %v195 = vrot.slane %v20, %v194
  %197 = vbcast.lane.b32.xlu0 %v195, 256
  %v198 = vpop.permute.xlu0 %197
  %v199 = vlaneseq
  %v200 = vshrl.u32 %v199, 7
  %v201 = vsub.s32 3, %v200
  %v202 = vrot.slane %v19, %v201
  %v203 = vlaneseq
  %v204 = vshrl.u32 %v203, 7
  %v205 = vsub.s32 3, %v204
  %v206 = vrot.slane %v20, %v205
  %vm207 = vcmp.eq.s32.totalorder %v191, %v202
  %vm208 = vcmp.eq.s32.totalorder %v198, %v206
  %v209 = vsel %vm207, %v148, 0.0
  %v210 = vsel %vm208, %v149, 0.0
  %v211 = vsel %vm170, %v209, 0.0
  %v212 = vrot.slane %v211, 4
  %v213 = vadd.f32 %v211, %v212
  %v214 = vrot.slane %v213, 2
  %v215 = vadd.f32 %v213, %v214
  %v216 = vrot.slane %v215, 1
  %v217 = vadd.f32 %v215, %v216
  %v218 = vsel %vm170, %v210, 0.0
  %v219 = vrot.slane %v218, 4
  %v220 = vadd.f32 %v218, %v219
  %v221 = vrot.slane %v220, 2
  %v222 = vadd.f32 %v220, %v221
  %v223 = vrot.slane %v222, 1
  %v224 = vadd.f32 %v222, %v223
  %v225 = vlog2.pop %v177
  %v226 = vmul.f32 %v225, 0.6931472
  %v227 = vlog2.pop %v184
  %v228 = vmul.f32 %v227, 0.6931472
  %v229 = vsub.f32 %v226, %v217
  %v230 = vsub.f32 %v228, %v224
  %vm231 = vcmp.gt.f32.partialorder %v21, 0.0
  %vm232 = vcmp.gt.f32.partialorder %v22, 0.0
  %v233 = vsel %vm231, %v229, 0.0
  %v234 = vsel %vm232, %v230, 0.0
  %v237 = vrot.slane %v234, 7
  %vm238 = vcmask 1043459
  %v239 = vsel %vm238, %v237, %v233
  %vm241 = vcmask 60418
  %v242 = vsel %vm241, %v239, 0.0
  %243 = vadd.xlane.f32.xlu0 %v242
  %v244 = vpop.xlane.xlu0 %243
  %v247 = vrot.slane %v22, 7
  %v248 = vsel %vm238, %v247, %v21
  %v250 = vsel %vm241, %v248, 0.0
  %251 = vadd.xlane.f32.xlu0 %v250
  %v252 = vpop.xlane.xlu0 %251
  %v253 = vrcp.pop %v252
  %v254 = vmul.f32 %v244, %v253
  %v256 = vlaneseq
  %v257 = vand.u32 %v256, 127
  %v258 = vadd.s32 %v257, 2
  %v259 = vlaneseq
  %v260 = vshrl.u32 %v259, 7
  %v261 = vsub.s32 %v258, %v260
  %v262 = vrot.slane %v254, %v261
  %vm264 = vcmask 10242
  %265 = vst.msk [vmem:[%s3 - $0x2] sm:$0x4] %vm264, %v262
  // Predicated region
  $region14: #{ntxent_loss.1} parent=0 // pred_check
    _
  $region15: #{ntxent_loss.1} parent=0 // pred_check_branch
    %267 = sbr.rel (0) target = $region17
  $region16: #{ntxent_loss.1} parent=0 // pred_region
    _
  $region17: #{ntxent_loss.1} parent=0 // pred_fallthru
    _
  // Predicated region
  $region18: #{ntxent_loss.1} parent=0 // pred_check
    _
  $region19: #{ntxent_loss.1} parent=0 // pred_check_branch
    %269 = sbr.rel (0) target = $region21
  $region20: #{ntxent_loss.1} parent=0 // pred_region
    _
  $region21: #{ntxent_loss.1} parent=0 // pred_fallthru
    _

</llo_original>
